<compile_context>
chip_gen: v5e
topology: v5e:2x2
jax: 0.10.0
libtpu: 0.0.40
codegen_flags: <defaults>
</compile_context>

<pallas_src>
import functools

import jax
import jax.numpy as jnp
from jax.experimental import pallas as pl
from jax.experimental.pallas import tpu as pltpu


def _focal_partial_kernel(logits_ref, target_ref, out_ref, *, n_valid):
    """One row-tile: write [sum(CE rows), sum(target rows), 0, ...] to 128 lanes."""
    i = pl.program_id(0)
    x = logits_ref[...].astype(jnp.float32)        # (TM, C) f32 (upcast in VMEM)
    t = target_ref[...]                            # (TM, 1) int32
    tm, c = x.shape

    # One-hot gather of the target logit: (1, C) class iota broadcast against
    # (TM, 1) targets (no (TM, C) iota materialization).
    cols = jax.lax.broadcasted_iota(jnp.int32, (1, c), 1)
    onehot = cols == t                                                   # (TM, C)

    # Row-wise stable log-sum-exp and target logit.
    m = jnp.max(x, axis=-1, keepdims=True)                               # (TM, 1)
    lse = jnp.log(jnp.sum(jnp.exp(x - m), axis=-1, keepdims=True)) + m   # (TM, 1)
    tgt = jnp.sum(jnp.where(onehot, x, 0.0), axis=-1, keepdims=True)     # (TM, 1)

    ce = lse - tgt                                                       # (TM, 1)
    tf = t.astype(jnp.float32)                                           # (TM, 1)

    # Ragged last tile: mask rows past the true batch size.  Static check, so
    # fully-divisible batches emit no mask code at all.  Row-wise reductions
    # above never mix garbage rows into valid rows, and the select below stops
    # NaN/Inf from the OOB-padded region leaking into the sums.
    if n_valid % tm != 0:
        row = i * tm + jax.lax.broadcasted_iota(jnp.int32, (tm, 1), 0)
        valid = row < n_valid
        ce = jnp.where(valid, ce, 0.0)
        tf = jnp.where(valid, tf, 0.0)

    # Single lane-dense store: lane 0 = partial CE sum, lane 1 = partial target
    # sum, lanes 2..127 = 0.  One unmasked (1,128) vst per grid step.
    lane = jax.lax.broadcasted_iota(jnp.int32, (1, 1, 128), 2)
    out_ref[...] = jnp.where(lane == 0, jnp.sum(ce),
                             jnp.where(lane == 1, jnp.sum(tf), 0.0))


def _static_pow(base, gamma):
    """base**gamma, using repeated multiplies when gamma is a small static integer."""
    g = float(gamma)
    if g == int(g) and 0 <= int(g) <= 8:
        out = jnp.ones_like(base)
        for _ in range(int(g)):
            out = out * base
        return out
    return base ** g


def focal_loss_2(logits, target, gamma=2.0, alpha=0.25, *, tm=None):
    """FocalLoss_2.forward. logits: (N, C) float (f32 or bf16), target: (N,) int.

    Returns a scalar f32.  Passing bf16 logits halves HBM traffic; the kernel
    upcasts to f32 inside VMEM so the softmax math is always f32.
    """
    del alpha  # defined on the module but never used in its forward()
    n, c = logits.shape
    target2d = target.astype(jnp.int32).reshape(n, 1)

    itemsize = jnp.dtype(logits.dtype).itemsize
    # Native sublane tile for the input dtype: f32 -> 8, bf16 -> 16, int8 -> 32.
    mult = 8 * max(1, 4 // itemsize)

    if tm is None:
        # VMEM budget for the streamed tile: 2 double-buffered input copies plus
        # the in-kernel f32 upcast and ~1 f32 elementwise temporary per element.
        budget = 16 * 1024 * 1024
        per_row = 2 * c * itemsize + 2 * c * 4
        tm = max(mult, min(2048, budget // per_row))
        tm = (tm // mult) * mult
        # Keep the grid >= ~8 steps so v7x's two TensorCores both get work and
        # the pipeline prologue/epilogue is hidden on short batches.
        if n >= 8 * mult:
            depth_tm = max(mult, ((n // 8) // mult) * mult)
            tm = min(tm, depth_tm)
    # Never exceed the (sublane-padded) batch, keep a sublane-tile multiple.
    tm = min(tm, max(mult, ((n + mult - 1) // mult) * mult))
    tm = max(mult, (tm // mult) * mult)
    num_tiles = pl.cdiv(n, tm)

    kernel = functools.partial(_focal_partial_kernel, n_valid=n)

    cost = pl.CostEstimate(
        flops=5 * n * c,
        transcendentals=n * c + n,
        bytes_accessed=n * c * itemsize + n * 4 + num_tiles * 128 * 4,
    )

    partials = pl.pallas_call(
        kernel,
        out_shape=jax.ShapeDtypeStruct((num_tiles, 1, 128), jnp.float32),
        grid=(num_tiles,),
        in_specs=[
            pl.BlockSpec((tm, c), lambda i: (i, 0)),
            pl.BlockSpec((tm, 1), lambda i: (i, 0)),
        ],
        out_specs=pl.BlockSpec((1, 1, 128), lambda i: (i, 0, 0)),
        compiler_params=pltpu.CompilerParams(
            dimension_semantics=("parallel",),
            vmem_limit_bytes=48 * 1024 * 1024,
        ),
        cost_estimate=cost,
    )(logits, target2d)

    # Finalize: tiny scalar math in the wrapper (keeps the grid axis parallel
    # for v7x megacore; costs a handful of XLA scalar ops).
    nf = jnp.float32(n)
    logp = jnp.sum(partials[:, 0, 0]) / nf     # mean cross-entropy
    t_bar = jnp.sum(partials[:, 0, 1]) / nf    # mean(target)
    p = jnp.exp(-logp)
    loss = logp * (_static_pow(1.0 - p, gamma) * t_bar
                   + _static_pow(p, gamma) * (1.0 - t_bar))
    return loss

# TODO(synk): add a class-axis grid with online (flash-style) LSE for class counts
# too large for a single (TM, C) VMEM block; current design assumes C fits one block.


def _reference(logits, target, gamma):
    # Pure-JAX reference matching the PyTorch FocalLoss_2.forward.
    x = logits.astype(jnp.float32)
    lse = jax.scipy.special.logsumexp(x, axis=-1)
    tgt = jnp.take_along_axis(x, target[:, None].astype(jnp.int32), axis=-1)[:, 0]
    logp = jnp.mean(lse - tgt)
    p = jnp.exp(-logp)
    tf = target.astype(jnp.float32)
    loss = (1.0 - p) ** gamma * logp * tf + p ** gamma * logp * (1.0 - tf)
    return jnp.mean(loss)


if __name__ == "__main__":
    key = jax.random.PRNGKey(0)
    k1, k2 = jax.random.split(key)

    # Lane-dense class dim (multiple of 128); N chosen so the auto TM gives a
    # ragged last tile (masking path exercised) and a ~9-step grid.
    N, C = 1000, 256
    gamma = 2.0

    logits = jax.random.normal(k1, (N, C), dtype=jnp.float32)
    target = jax.random.randint(k2, (N,), 0, C, dtype=jnp.int32)

    # f32 path
    loss = jax.block_until_ready(focal_loss_2(logits, target, gamma=gamma))
    ref = _reference(logits, target, gamma)
    assert jnp.allclose(loss, ref, rtol=1e-5, atol=1e-5), (loss, ref)

    # bf16 path (recommended caller contract: halves HBM traffic; kernel
    # upcasts to f32 in VMEM).  Exercises the 16-row sublane-tile rounding.
    logits_bf16 = logits.astype(jnp.bfloat16)
    loss_b = jax.block_until_ready(focal_loss_2(logits_bf16, target, gamma=gamma))
    ref_b = _reference(logits_bf16, target, gamma)
    assert jnp.allclose(loss_b, ref_b, rtol=1e-3, atol=1e-3), (loss_b, ref_b)

    print("KERNEL_OK")
</pallas_src>

<mosaic_0001>
module attributes {stable_mosaic.version = 11 : i64} {
  func.func @_focal_partial_kernel(%arg0: i32, %arg1: memref<120x256xf32, #tpu.memory_space<vmem>>, %arg2: memref<120x1xi32, #tpu.memory_space<vmem>>, %arg3: memref<1x1x128xf32, #tpu.memory_space<vmem>>) attributes {dimension_semantics = [#tpu.dimension_semantics<parallel>], iteration_bounds = array<i64: 9>, scalar_prefetch = 0 : i64, scratch_operands = 0 : i64, tpu.core_type = #tpu.core_type<tc>, window_params = [{transform_indices = @transform_0, window_bounds = array<i64: 120, 256>}, {transform_indices = @transform_1, window_bounds = array<i64: 120, 1>}, {transform_indices = @transform_2, window_bounds = array<i64: 1, 1, 128>}]} {
    %c0 = arith.constant 0 : index
    %c0_0 = arith.constant 0 : index
    %0 = vector.load %arg1[%c0, %c0_0] : memref<120x256xf32, #tpu.memory_space<vmem>>, vector<120x256xf32>
    %c0_1 = arith.constant 0 : index
    %c0_2 = arith.constant 0 : index
    %1 = vector.load %arg2[%c0_1, %c0_2] : memref<120x1xi32, #tpu.memory_space<vmem>>, vector<120x1xi32>
    %2 = tpu.iota {dimensions = array<i32: 1>} : vector<1x256xi32>
    %3 = vector.broadcast %2 : vector<1x256xi32> to vector<120x256xi32>
    %4 = vector.broadcast %1 : vector<120x1xi32> to vector<120x256xi32>
    %5 = arith.cmpi eq, %3, %4 : vector<120x256xi32>
    %cst = arith.constant dense<0xFF800000> : vector<120xf32>
    %6 = vector.multi_reduction <maximumf>, %0, %cst [1] : vector<120x256xf32> to vector<120xf32>
    %7 = vector.shape_cast %6 : vector<120xf32> to vector<120x1xf32>
    %8 = vector.broadcast %7 : vector<120x1xf32> to vector<120x256xf32>
    %9 = arith.subf %0, %8 : vector<120x256xf32>
    %10 = math.exp %9 : vector<120x256xf32>
    %cst_3 = arith.constant dense<0.000000e+00> : vector<120xf32>
    %11 = vector.multi_reduction <add>, %10, %cst_3 [1] : vector<120x256xf32> to vector<120xf32>
    %12 = vector.shape_cast %11 : vector<120xf32> to vector<120x1xf32>
    %13 = math.log %12 : vector<120x1xf32>
    %14 = arith.addf %13, %7 : vector<120x1xf32>
    %cst_4 = arith.constant 0.000000e+00 : f32
    %15 = vector.broadcast %cst_4 : f32 to vector<120x256xf32>
    %16 = arith.select %5, %0, %15 : vector<120x256xi1>, vector<120x256xf32>
    %cst_5 = arith.constant dense<0.000000e+00> : vector<120xf32>
    %17 = vector.multi_reduction <add>, %16, %cst_5 [1] : vector<120x256xf32> to vector<120xf32>
    %18 = vector.shape_cast %17 : vector<120xf32> to vector<120x1xf32>
    %19 = arith.subf %14, %18 : vector<120x1xf32>
    %20 = arith.sitofp %1 : vector<120x1xi32> to vector<120x1xf32>
    %c120_i32 = arith.constant 120 : i32
    %21 = arith.muli %arg0, %c120_i32 : i32
    %22 = tpu.iota {dimensions = array<i32: 0>} : vector<120x1xi32>
    %23 = vector.broadcast %21 : i32 to vector<120x1xi32>
    %24 = arith.addi %23, %22 : vector<120x1xi32>
    %c1000_i32 = arith.constant 1000 : i32
    %25 = vector.broadcast %c1000_i32 : i32 to vector<120x1xi32>
    %26 = arith.cmpi slt, %24, %25 : vector<120x1xi32>
    %cst_6 = arith.constant 0.000000e+00 : f32
    %27 = vector.broadcast %cst_6 : f32 to vector<120x1xf32>
    %28 = arith.select %26, %19, %27 : vector<120x1xi1>, vector<120x1xf32>
    %cst_7 = arith.constant 0.000000e+00 : f32
    %29 = vector.broadcast %cst_7 : f32 to vector<120x1xf32>
    %30 = arith.select %26, %20, %29 : vector<120x1xi1>, vector<120x1xf32>
    %31 = tpu.iota {dimensions = array<i32: 2>} : vector<1x1x128xi32>
    %c0_i32 = arith.constant 0 : i32
    %32 = vector.broadcast %c0_i32 : i32 to vector<1x1x128xi32>
    %33 = arith.cmpi eq, %31, %32 : vector<1x1x128xi32>
    %34 = vector.shape_cast %28 : vector<120x1xf32> to vector<1x120x1xf32>
    %cst_8 = arith.constant dense<0.000000e+00> : vector<1xf32>
    %35 = vector.multi_reduction <add>, %34, %cst_8 [1, 2] : vector<1x120x1xf32> to vector<1xf32>
    %36 = vector.shape_cast %35 : vector<1xf32> to vector<1x1x1xf32>
    %37 = vector.extract %36[0, 0, 0] : f32 from vector<1x1x1xf32>
    %c1_i32 = arith.constant 1 : i32
    %38 = vector.broadcast %c1_i32 : i32 to vector<1x1x128xi32>
    %39 = arith.cmpi eq, %31, %38 : vector<1x1x128xi32>
    %40 = vector.shape_cast %30 : vector<120x1xf32> to vector<1x120x1xf32>
    %cst_9 = arith.constant dense<0.000000e+00> : vector<1xf32>
    %41 = vector.multi_reduction <add>, %40, %cst_9 [1, 2] : vector<1x120x1xf32> to vector<1xf32>
    %42 = vector.shape_cast %41 : vector<1xf32> to vector<1x1x1xf32>
    %43 = vector.extract %42[0, 0, 0] : f32 from vector<1x1x1xf32>
    %cst_10 = arith.constant 0.000000e+00 : f32
    %44 = vector.broadcast %43 : f32 to vector<1x1x128xf32>
    %45 = vector.broadcast %cst_10 : f32 to vector<1x1x128xf32>
    %46 = arith.select %39, %44, %45 : vector<1x1x128xi1>, vector<1x1x128xf32>
    %47 = vector.broadcast %37 : f32 to vector<1x1x128xf32>
    %48 = arith.select %33, %47, %46 : vector<1x1x128xi1>, vector<1x1x128xf32>
    %c0_11 = arith.constant 0 : index
    %c0_12 = arith.constant 0 : index
    %c0_13 = arith.constant 0 : index
    %49 = vector.load %arg3[%c0_11, %c0_12, %c0_13] : memref<1x1x128xf32, #tpu.memory_space<vmem>>, vector<1x1x128xf32>
    tpu.vector_store %arg3[%c0_11, %c0_12, %c0_13], %48 {strides = array<i32>} : memref<1x1x128xf32, #tpu.memory_space<vmem>>, vector<1x1x128xf32>,
    return
  }
  func.func @transform_0(%arg0: i32) -> (i32, i32) {
    %c0_i32 = arith.constant 0 : i32
    %c0_i32_0 = arith.constant 0 : i32
    return %arg0, %c0_i32 : i32, i32
  }
  func.func @transform_1(%arg0: i32) -> (i32, i32) {
    %c0_i32 = arith.constant 0 : i32
    %c0_i32_0 = arith.constant 0 : i32
    return %arg0, %c0_i32 : i32, i32
  }
  func.func @transform_2(%arg0: i32) -> (i32, i32, i32) {
    %c0_i32 = arith.constant 0 : i32
    %c0_i32_0 = arith.constant 0 : i32
    %c0_i32_1 = arith.constant 0 : i32
    return %arg0, %c0_i32, %c0_i32_0 : i32, i32, i32
  }
}

</mosaic_0001>

<llo_original>
// kernel: tpu_custom_call.1
$region0: #{tpu_custom_call.1}
  #allocation0 [shape = 'u32[]', space=smem, size = 0x4, offset = 0x4, fixed_abs, tag = 'smem constant byte address 0x4 - core index']
  #allocation1 [shape = 'u32[72,128]{1,0:T(1,128)}', space=vmem, size = 0x9000, scoped, tag = 'internal scratch']
  %s0 = inlined_call_operand.hbm [shape: f32[1000,256], index: 0, kind: input, shape index: {}]
  %s1 = inlined_call_operand.vmem [shape: s32[1000,1], index: 1, kind: input, shape index: {}]
  %s2 = inlined_call_operand.hbm [shape: f32[9,1,128], index: 2, kind: output, shape index: {}]
  %s3 = sld [smem:[#allocation0]]
  $region45: #{tpu_custom_call.1} parent=0
    _
  %s5 = ssub.s32 1, %s3
  %s6 = scalar_select 0, %s5, %s3
  $region1: #{tpu_custom_call.1} parent=0
    #allocation2 [shape = 'u8[245760]{0}', space=vmem, size = 0x3c000, scoped, tag = 'input window, operand 0']
    #allocation3 [shape = 's32[2]{0}', space=sflag, size = 0x8, scoped, tag = 'scoped memory for tpu_custom_call.1']
    #allocation4 [shape = 's32[2]{0}', space=sflag, size = 0x8, scoped, tag = 'scoped memory for tpu_custom_call.1']
    #allocation5 [shape = 'u8[1024]{0}', space=vmem, size = 0x400, scoped, tag = 'output window, operand 0']
    %7 = vsyncpa [#allocation3], 0
    %s8 = scalar_lea.sflag [#allocation3], 1
    %9 = vsyncpa %s8, 0
    %10 = vsyncpa [#allocation4], 0
    %s11 = scalar_lea.sflag [#allocation4], 1
    %12 = vsyncpa %s11, 0
    loop: start=0, step=1, limit=11
    $region2: #{tpu_custom_call.1} parent=1 // loop_pre_header
      _
    $region3: #{tpu_custom_call.1} parent=1 // loop_header
      %s14 = sphi 0, %s18
      %p15 = scmp.ge.s32.totalorder %s14, 11
      %s24 = sphi 0, %s26
      %s27 = sphi 0, %s24
      %s28 = sphi 0, %s27
      %s44 = sphi 0, %s28
      %s50 = sphi 0, %s52
      %s53 = sphi 0, %s50
      %s54 = sphi 0, %s53
      %s70 = sphi 0, %s54
      %s76 = sphi 0, %s78
      %s79 = sphi 0, %s76
      %s80 = sphi 0, %s79
      %s96 = sphi 0, %s80
    $region4: #{tpu_custom_call.1} parent=1 // loop_header_branch
      %17 = sbr.rel (%p15) target = $region8
    $region5: #{tpu_custom_call.1} parent=1 // loop_body
      %s19 = ssub.s32 %s14, 1
      %s20 = ssub.s32 %s14, 2
      %s21 = sadd.s32 %s14, 1
      %s22 = ssub.s32 %s14, %s21
      %p23 = scmp.eq.s32.totalorder %s22, 0
      %s25 = sadd.s32 %s24, 1
      %s26 = scalar_select %p23, %s24, %s25
      %p29 = pneg %p23
      %p30 = scmp.eq.s32.totalorder %s14, 8
      %p31 = por %p29, %p30
      %p32 = scmp.ne.s32.totalorder %s24, %s27
      %p33 = scmp.eq.s32.totalorder %s14, 0
      %p34 = por %p32, %p33
      %p35 = scmp.ne.s32.totalorder %s24, %s27
      %p36 = scmp.eq.s32.totalorder %s19, 8
      %p37 = por %p35, %p36
      %p38 = scmp.ne.s32.totalorder %s27, %s28
      %p39 = scmp.eq.s32.totalorder %s19, 0
      %p40 = por %p38, %p39
      %p41 = scmp.ne.s32.totalorder %s27, %s28
      %p42 = scmp.eq.s32.totalorder %s20, 8
      %p43 = por %p41, %p42
      %p45 = scmp.ne.s32.totalorder %s28, %s44
      %p46 = scmp.eq.s32.totalorder %s20, 0
      %p47 = por %p45, %p46
      %s48 = ssub.s32 %s14, %s21
      %p49 = scmp.eq.s32.totalorder %s48, 0
      %s51 = sadd.s32 %s50, 1
      %s52 = scalar_select %p49, %s50, %s51
      %p55 = pneg %p49
      %p56 = scmp.eq.s32.totalorder %s14, 8
      %p57 = por %p55, %p56
      %p58 = scmp.ne.s32.totalorder %s50, %s53
      %p59 = scmp.eq.s32.totalorder %s14, 0
      %p60 = por %p58, %p59
      %p61 = scmp.ne.s32.totalorder %s50, %s53
      %p62 = scmp.eq.s32.totalorder %s19, 8
      %p63 = por %p61, %p62
      %p64 = scmp.ne.s32.totalorder %s53, %s54
      %p65 = scmp.eq.s32.totalorder %s19, 0
      %p66 = por %p64, %p65
      %p67 = scmp.ne.s32.totalorder %s53, %s54
      %p68 = scmp.eq.s32.totalorder %s20, 8
      %p69 = por %p67, %p68
      %p71 = scmp.ne.s32.totalorder %s54, %s70
      %p72 = scmp.eq.s32.totalorder %s20, 0
      %p73 = por %p71, %p72
      %s74 = ssub.s32 %s14, %s21
      %p75 = scmp.eq.s32.totalorder %s74, 0
      %s77 = sadd.s32 %s76, 1
      %s78 = scalar_select %p75, %s76, %s77
      %p81 = pneg %p75
      %p82 = scmp.eq.s32.totalorder %s14, 8
      %p83 = por %p81, %p82
      %p84 = scmp.ne.s32.totalorder %s76, %s79
      %p85 = scmp.eq.s32.totalorder %s14, 0
      %p86 = por %p84, %p85
      %p87 = scmp.ne.s32.totalorder %s76, %s79
      %p88 = scmp.eq.s32.totalorder %s19, 8
      %p89 = por %p87, %p88
      %p90 = scmp.ne.s32.totalorder %s79, %s80
      %p91 = scmp.eq.s32.totalorder %s19, 0
      %p92 = por %p90, %p91
      %p93 = scmp.ne.s32.totalorder %s79, %s80
      %p94 = scmp.eq.s32.totalorder %s20, 8
      %p95 = por %p93, %p94
      %p97 = scmp.ne.s32.totalorder %s80, %s96
      %p98 = scmp.eq.s32.totalorder %s20, 0
      %p99 = por %p97, %p98
      %p100 = scmp.le.s32.totalorder 1, %s14
      %p101 = scmp.lt.s32.totalorder %s14, 10
      %p102 = pnand %p100, %p101
      %p103 = pneg %p102
      // Predicated region
      $region9: #{tpu_custom_call.1} parent=5 // pred_check
        _
      $region10: #{tpu_custom_call.1} parent=5 // pred_check_branch
        %105 = sbr.rel (%p102) target = $region12
      $region11: #{tpu_custom_call.1} parent=5 // pred_region
        %s106 = ssub.s32 %s14, 1
      $region12: #{tpu_custom_call.1} parent=5 // pred_fallthru
        _
      %p107 = scmp.lt.s32.totalorder %s14, 9
      // Predicated region
      $region13: #{tpu_custom_call.1} parent=5 // pred_check
        %p108 = pneg %p107
      $region14: #{tpu_custom_call.1} parent=5 // pred_check_branch
        %110 = sbr.rel (%p108) target = $region16
      $region15: #{tpu_custom_call.1} parent=5 // pred_region
        // Predicated region
        $region17: #{tpu_custom_call.1} parent=15 // pred_check
          %p111 = pneg %p34
        $region18: #{tpu_custom_call.1} parent=15 // pred_check_branch
          %113 = sbr.rel (%p111) target = $region20
        $region19: #{tpu_custom_call.1} parent=15 // pred_region
          %s114 = sand.u32 %s24, 1
          %s115 = scalar_lea.sflag [#allocation3], %s114
          %s116 = sand.u32 %s24, 1
          %s117 = smul.addr %s116, 240
          %s118 = scalar_lea.vmem [#allocation2], %s117
          %s119 = smul.u32 15, %s14
          %s120 = ssub.s32 125, %s119
          %p121 = scmp.lt.s32.totalorder %s120, 15
          %s122 = scalar_select %p121, %s120, 15
          %s123 = smul.u32 8, %s122
          %s124 = smul.u32 %s123, 2
          %s125 = ssub.s32 240, %s124
          %s126 = sshll.u32 %s125, 4
          %127 = vsyncadd %s115, %s126
          %p128 = scmp.ne.s32.totalorder 0, %s124
          %s129 = smul.addr %s119, 2
          %s130 = smul.addr %s129, 8
          %s131 = scalar_lea.hbm %s0, %s130
          %s132 = smul.u32 16, %s122
          %s133 = sshll.u32 %s131, 4
          %s134 = int_to_ptr.hbm [resolvable:$true] %s133
          %s135 = sshll.u32 %s118, 4
          %s136 = int_to_ptr.vmem [resolvable:$true] %s135
          %s137 = sshll.u32 %s132, 4
          %141 = dma.hbm_to_vmem [thread:$0]  (%p128), %s134, %s137, %s136, %s115, 256, 256, 16
        $region20: #{tpu_custom_call.1} parent=15 // pred_fallthru
          _
        // Predicated region
        $region21: #{tpu_custom_call.1} parent=15 // pred_check
          %p142 = pneg %p60
        $region22: #{tpu_custom_call.1} parent=15 // pred_check_branch
          %144 = sbr.rel (%p142) target = $region24
        $region23: #{tpu_custom_call.1} parent=15 // pred_region
          %s145 = smul.u32 15, %s14
          %s146 = ssub.s32 125, %s145
          %p147 = scmp.lt.s32.totalorder %s146, 15
          %s148 = scalar_select %p147, %s146, 15
          %s149 = smul.u32 8, %s148
          %p150 = scmp.lt.s32.totalorder %s145, 124
          %s151 = scalar_select %p150, %s145, 124
          %s152 = smul.addr %s151, 8
          %s153 = scalar_lea.vmem %s1, %s152
          %s154 = smul.u32 15, %s14
          %s155 = ssub.s32 125, %s154
          %p156 = scmp.lt.s32.totalorder %s155, 15
          %s157 = scalar_select %p156, %s155, 15
          %s158 = smul.u32 8, %s157
        $region24: #{tpu_custom_call.1} parent=15 // pred_fallthru
          _
      $region16: #{tpu_custom_call.1} parent=5 // pred_fallthru
        _
      %p159 = scmp.le.s32.totalorder 1, %s14
      %p160 = scmp.lt.s32.totalorder %s14, 10
      %p161 = pnand %p159, %p160
      %p162 = pneg %p161
      // Predicated region
      $region25: #{tpu_custom_call.1} parent=5 // pred_check
        _
      $region26: #{tpu_custom_call.1} parent=5 // pred_check_branch
        %164 = sbr.rel (%p161) target = $region28
      $region27: #{tpu_custom_call.1} parent=5 // pred_region
        %s165 = ssub.s32 %s14, 1
        %s166 = sand.u32 %s27, 1
        %s167 = scalar_lea.sflag [#allocation3], %s166
        %s168 = sand.u32 %s27, 1
        %s169 = smul.addr %s168, 240
        %s170 = scalar_lea.vmem [#allocation2], %s169
        // Predicated region
        $region29: #{tpu_custom_call.1} parent=27 // pred_check
          %p171 = pneg %p40
        $region30: #{tpu_custom_call.1} parent=27 // pred_check_branch
          %173 = sbr.rel (%p171) target = $region32
        $region31: #{tpu_custom_call.1} parent=27 // pred_region
          %175 = dma.done %s167, 3840
        $region32: #{tpu_custom_call.1} parent=27 // pred_fallthru
          _
        %s176 = sand.u32 %s27, 1
        %s177 = scalar_lea.sflag [#allocation3], %s176
        %s178 = sand.u32 %s27, 1
        %s179 = smul.addr %s178, 240
        %s180 = scalar_lea.vmem [#allocation2], %s179
        %p181 = pneg %p40
        %p182 = pneg %p37
        %s183 = smul.u32 15, %s19
        %s184 = ssub.s32 125, %s183
        %p185 = scmp.lt.s32.totalorder %s184, 15
        %s186 = scalar_select %p185, %s184, 15
        %s187 = smul.u32 8, %s186
        %p188 = scmp.lt.s32.totalorder %s183, 124
        %s189 = scalar_select %p188, %s183, 124
        %s190 = smul.addr %s189, 8
        %s191 = scalar_lea.vmem %s1, %s190
        %p192 = pneg %p66
        %p193 = pneg %p63
        %p194 = pneg %p92
        %p195 = pneg %p89
        %s196 = sand.u32 %s79, 1
        %s197 = scalar_lea.sflag [#allocation4], %s196
        %s198 = sand.u32 %s79, 1
        %s199 = scalar_lea.vmem [#allocation5], %s198
        %s200 = smul.u32 15, %s19
        %s201 = ssub.s32 125, %s200
        %p202 = scmp.lt.s32.totalorder %s201, 15
        %s203 = scalar_select %p202, %s201, 15
        %s204 = smul.u32 8, %s203
        %s205 = smul.u32 %s204, 2
        %s206 = smul.u32 15, %s19
        %s207 = ssub.s32 125, %s206
        %p208 = scmp.lt.s32.totalorder %s207, 15
        %s209 = scalar_select %p208, %s207, 15
        %s210 = smul.u32 8, %s209
        %p211 = scmp.lt.s32.totalorder %s206, 124
        %s212 = scalar_select %p211, %s206, 124
        %s213 = smul.addr %s212, 8
        %s214 = scalar_lea.vmem %s1, %s213
        %s215 = smul.u32 15, %s19
        %s216 = ssub.s32 125, %s215
        %p217 = scmp.lt.s32.totalorder %s216, 15
        %s218 = scalar_select %p217, %s216, 15
        %s219 = smul.u32 8, %s218
        %v220 = vld [vmem:[%s170] sm:$0xff]
        %v221 = vld [vmem:[%s170 + $0x8] sm:$0xff]
        %v222 = vld [vmem:[%s170 + $0x10] sm:$0xff]
        %v223 = vld [vmem:[%s170 + $0x18] sm:$0xff]
        %v224 = vld [vmem:[%s170 + $0x20] sm:$0xff]
        %v225 = vld [vmem:[%s170 + $0x28] sm:$0xff]
        %v226 = vld [vmem:[%s170 + $0x30] sm:$0xff]
        %v227 = vld [vmem:[%s170 + $0x38] sm:$0xff]
        %v228 = vld [vmem:[%s170 + $0x40] sm:$0xff]
        %v229 = vld [vmem:[%s170 + $0x48] sm:$0xff]
        %v230 = vld [vmem:[%s170 + $0x50] sm:$0xff]
        %v231 = vld [vmem:[%s170 + $0x58] sm:$0xff]
        %v232 = vld [vmem:[%s170 + $0x60] sm:$0xff]
        %v233 = vld [vmem:[%s170 + $0x68] sm:$0xff]
        %v234 = vld [vmem:[%s170 + $0x70] sm:$0xff]
        %v235 = vld [vmem:[%s170 + $0x78] sm:$0xff]
        %v236 = vld [vmem:[%s170 + $0x80] sm:$0xff]
        %v237 = vld [vmem:[%s170 + $0x88] sm:$0xff]
        %v238 = vld [vmem:[%s170 + $0x90] sm:$0xff]
        %v239 = vld [vmem:[%s170 + $0x98] sm:$0xff]
        %v240 = vld [vmem:[%s170 + $0xa0] sm:$0xff]
        %v241 = vld [vmem:[%s170 + $0xa8] sm:$0xff]
        %v242 = vld [vmem:[%s170 + $0xb0] sm:$0xff]
        %v243 = vld [vmem:[%s170 + $0xb8] sm:$0xff]
        %v244 = vld [vmem:[%s170 + $0xc0] sm:$0xff]
        %v245 = vld [vmem:[%s170 + $0xc8] sm:$0xff]
        %v246 = vld [vmem:[%s170 + $0xd0] sm:$0xff]
        %v247 = vld [vmem:[%s170 + $0xd8] sm:$0xff]
        %v248 = vld [vmem:[%s170 + $0xe0] sm:$0xff]
        %v249 = vld [vmem:[%s170 + $0xe8] sm:$0xff]
        %v250 = vld [vmem:[%s214] sm:$0xff]
        %v251 = vld [vmem:[%s214 + $0x8] sm:$0xff]
        %v252 = vld [vmem:[%s214 + $0x10] sm:$0xff]
        %v253 = vld [vmem:[%s214 + $0x18] sm:$0xff]
        %v254 = vld [vmem:[%s214 + $0x20] sm:$0xff]
        %v255 = vld [vmem:[%s214 + $0x28] sm:$0xff]
        %v256 = vld [vmem:[%s214 + $0x30] sm:$0xff]
        %v257 = vld [vmem:[%s214 + $0x38] sm:$0xff]
        %v258 = vld [vmem:[%s214 + $0x40] sm:$0xff]
        %v259 = vld [vmem:[%s214 + $0x48] sm:$0xff]
        %v260 = vld [vmem:[%s214 + $0x50] sm:$0xff]
        %v261 = vld [vmem:[%s214 + $0x58] sm:$0xff]
        %v262 = vld [vmem:[%s214 + $0x60] sm:$0xff]
        %v263 = vld [vmem:[%s214 + $0x68] sm:$0xff]
        %v264 = vld [vmem:[%s214 + $0x70] sm:$0xff]
        %v265 = vlaneseq
        %v266 = vand.u32 %v265, 127
        %v267 = vadd.s32 %v266, 128
        %268 = vset.pattern.permute.xlu0 0
        %269 = vperm.xlu0 %268, %v250
        %v270 = vpop.permute.xlu0 %269
        %271 = vset.pattern.permute.xlu0 0
        %272 = vperm.xlu0 %271, %v251
        %v273 = vpop.permute.xlu0 %272
        %274 = vset.pattern.permute.xlu0 0
        %275 = vperm.xlu0 %274, %v252
        %v276 = vpop.permute.xlu0 %275
        %277 = vset.pattern.permute.xlu0 0
        %278 = vperm.xlu0 %277, %v253
        %v279 = vpop.permute.xlu0 %278
        %280 = vset.pattern.permute.xlu0 0
        %281 = vperm.xlu0 %280, %v254
        %v282 = vpop.permute.xlu0 %281
        %283 = vset.pattern.permute.xlu0 0
        %284 = vperm.xlu0 %283, %v255
        %v285 = vpop.permute.xlu0 %284
        %286 = vset.pattern.permute.xlu0 0
        %287 = vperm.xlu0 %286, %v256
        %v288 = vpop.permute.xlu0 %287
        %289 = vset.pattern.permute.xlu0 0
        %290 = vperm.xlu0 %289, %v257
        %v291 = vpop.permute.xlu0 %290
        %292 = vset.pattern.permute.xlu0 0
        %293 = vperm.xlu0 %292, %v258
        %v294 = vpop.permute.xlu0 %293
        %295 = vset.pattern.permute.xlu0 0
        %296 = vperm.xlu0 %295, %v259
        %v297 = vpop.permute.xlu0 %296
        %298 = vset.pattern.permute.xlu0 0
        %299 = vperm.xlu0 %298, %v260
        %v300 = vpop.permute.xlu0 %299
        %301 = vset.pattern.permute.xlu0 0
        %302 = vperm.xlu0 %301, %v261
        %v303 = vpop.permute.xlu0 %302
        %304 = vset.pattern.permute.xlu0 0
        %305 = vperm.xlu0 %304, %v262
        %v306 = vpop.permute.xlu0 %305
        %307 = vset.pattern.permute.xlu0 0
        %308 = vperm.xlu0 %307, %v263
        %v309 = vpop.permute.xlu0 %308
        %310 = vset.pattern.permute.xlu0 0
        %311 = vperm.xlu0 %310, %v264
        %v312 = vpop.permute.xlu0 %311
        %vm313 = vcmp.eq.s32.totalorder %v266, %v270
        %vm314 = vcmp.eq.s32.totalorder %v267, %v270
        %vm315 = vcmp.eq.s32.totalorder %v266, %v273
        %vm316 = vcmp.eq.s32.totalorder %v267, %v273
        %vm317 = vcmp.eq.s32.totalorder %v266, %v276
        %vm318 = vcmp.eq.s32.totalorder %v267, %v276
        %vm319 = vcmp.eq.s32.totalorder %v266, %v279
        %vm320 = vcmp.eq.s32.totalorder %v267, %v279
        %vm321 = vcmp.eq.s32.totalorder %v266, %v282
        %vm322 = vcmp.eq.s32.totalorder %v267, %v282
        %vm323 = vcmp.eq.s32.totalorder %v266, %v285
        %vm324 = vcmp.eq.s32.totalorder %v267, %v285
        %vm325 = vcmp.eq.s32.totalorder %v266, %v288
        %vm326 = vcmp.eq.s32.totalorder %v267, %v288
        %vm327 = vcmp.eq.s32.totalorder %v266, %v291
        %vm328 = vcmp.eq.s32.totalorder %v267, %v291
        %vm329 = vcmp.eq.s32.totalorder %v266, %v294
        %vm330 = vcmp.eq.s32.totalorder %v267, %v294
        %vm331 = vcmp.eq.s32.totalorder %v266, %v297
        %vm332 = vcmp.eq.s32.totalorder %v267, %v297
        %vm333 = vcmp.eq.s32.totalorder %v266, %v300
        %vm334 = vcmp.eq.s32.totalorder %v267, %v300
        %vm335 = vcmp.eq.s32.totalorder %v266, %v303
        %vm336 = vcmp.eq.s32.totalorder %v267, %v303
        %vm337 = vcmp.eq.s32.totalorder %v266, %v306
        %vm338 = vcmp.eq.s32.totalorder %v267, %v306
        %vm339 = vcmp.eq.s32.totalorder %v266, %v309
        %vm340 = vcmp.eq.s32.totalorder %v267, %v309
        %vm341 = vcmp.eq.s32.totalorder %v266, %v312
        %vm342 = vcmp.eq.s32.totalorder %v267, %v312
        %v343 = vmax.f32 %v220, %v221
        %344 = vmax.xlane.f32.xlu0 %v343
        %v345 = vpop.xlane.xlu0 %344
        %v346 = vmax.f32 %v222, %v223
        %347 = vmax.xlane.f32.xlu0 %v346
        %v348 = vpop.xlane.xlu0 %347
        %v349 = vmax.f32 %v224, %v225
        %350 = vmax.xlane.f32.xlu0 %v349
        %v351 = vpop.xlane.xlu0 %350
        %v352 = vmax.f32 %v226, %v227
        %353 = vmax.xlane.f32.xlu0 %v352
        %v354 = vpop.xlane.xlu0 %353
        %v355 = vmax.f32 %v228, %v229
        %356 = vmax.xlane.f32.xlu0 %v355
        %v357 = vpop.xlane.xlu0 %356
        %v358 = vmax.f32 %v230, %v231
        %359 = vmax.xlane.f32.xlu0 %v358
        %v360 = vpop.xlane.xlu0 %359
        %v361 = vmax.f32 %v232, %v233
        %362 = vmax.xlane.f32.xlu0 %v361
        %v363 = vpop.xlane.xlu0 %362
        %v364 = vmax.f32 %v234, %v235
        %365 = vmax.xlane.f32.xlu0 %v364
        %v366 = vpop.xlane.xlu0 %365
        %v367 = vmax.f32 %v236, %v237
        %368 = vmax.xlane.f32.xlu0 %v367
        %v369 = vpop.xlane.xlu0 %368
        %v370 = vmax.f32 %v238, %v239
        %371 = vmax.xlane.f32.xlu0 %v370
        %v372 = vpop.xlane.xlu0 %371
        %v373 = vmax.f32 %v240, %v241
        %374 = vmax.xlane.f32.xlu0 %v373
        %v375 = vpop.xlane.xlu0 %374
        %v376 = vmax.f32 %v242, %v243
        %377 = vmax.xlane.f32.xlu0 %v376
        %v378 = vpop.xlane.xlu0 %377
        %v379 = vmax.f32 %v244, %v245
        %380 = vmax.xlane.f32.xlu0 %v379
        %v381 = vpop.xlane.xlu0 %380
        %v382 = vmax.f32 %v246, %v247
        %383 = vmax.xlane.f32.xlu0 %v382
        %v384 = vpop.xlane.xlu0 %383
        %v385 = vmax.f32 %v248, %v249
        %386 = vmax.xlane.f32.xlu0 %v385
        %v387 = vpop.xlane.xlu0 %386
        %v388 = vsub.f32 %v220, %v345
        %v389 = vsub.f32 %v221, %v345
        %v390 = vsub.f32 %v222, %v348
        %v391 = vsub.f32 %v223, %v348
        %v392 = vsub.f32 %v224, %v351
        %v393 = vsub.f32 %v225, %v351
        %v394 = vsub.f32 %v226, %v354
        %v395 = vsub.f32 %v227, %v354
        %v396 = vsub.f32 %v228, %v357
        %v397 = vsub.f32 %v229, %v357
        %v398 = vsub.f32 %v230, %v360
        %v399 = vsub.f32 %v231, %v360
        %v400 = vsub.f32 %v232, %v363
        %v401 = vsub.f32 %v233, %v363
        %v402 = vsub.f32 %v234, %v366
        %v403 = vsub.f32 %v235, %v366
        %v404 = vsub.f32 %v236, %v369
        %v405 = vsub.f32 %v237, %v369
        %v406 = vsub.f32 %v238, %v372
        %v407 = vsub.f32 %v239, %v372
        %v408 = vsub.f32 %v240, %v375
        %v409 = vsub.f32 %v241, %v375
        %v410 = vsub.f32 %v242, %v378
        %v411 = vsub.f32 %v243, %v378
        %v412 = vsub.f32 %v244, %v381
        %v413 = vsub.f32 %v245, %v381
        %v414 = vsub.f32 %v246, %v384
        %v415 = vsub.f32 %v247, %v384
        %v416 = vsub.f32 %v248, %v387
        %v417 = vsub.f32 %v249, %v387
        %v418 = vmul.f32 %v388, 1.442695
        %v419 = vpow.pop %v418
        %v420 = vmul.f32 %v389, 1.442695
        %v421 = vpow.pop %v420
        %v422 = vmul.f32 %v390, 1.442695
        %v423 = vpow.pop %v422
        %v424 = vmul.f32 %v391, 1.442695
        %v425 = vpow.pop %v424
        %v426 = vmul.f32 %v392, 1.442695
        %v427 = vpow.pop %v426
        %v428 = vmul.f32 %v393, 1.442695
        %v429 = vpow.pop %v428
        %v430 = vmul.f32 %v394, 1.442695
        %v431 = vpow.pop %v430
        %v432 = vmul.f32 %v395, 1.442695
        %v433 = vpow.pop %v432
        %v434 = vmul.f32 %v396, 1.442695
        %v435 = vpow.pop %v434
        %v436 = vmul.f32 %v397, 1.442695
        %v437 = vpow.pop %v436
        %v438 = vmul.f32 %v398, 1.442695
        %v439 = vpow.pop %v438
        %v440 = vmul.f32 %v399, 1.442695
        %v441 = vpow.pop %v440
        %v442 = vmul.f32 %v400, 1.442695
        %v443 = vpow.pop %v442
        %v444 = vmul.f32 %v401, 1.442695
        %v445 = vpow.pop %v444
        %v446 = vmul.f32 %v402, 1.442695
        %v447 = vpow.pop %v446
        %v448 = vmul.f32 %v403, 1.442695
        %v449 = vpow.pop %v448
        %v450 = vmul.f32 %v404, 1.442695
        %v451 = vpow.pop %v450
        %v452 = vmul.f32 %v405, 1.442695
        %v453 = vpow.pop %v452
        %v454 = vmul.f32 %v406, 1.442695
        %v455 = vpow.pop %v454
        %v456 = vmul.f32 %v407, 1.442695
        %v457 = vpow.pop %v456
        %v458 = vmul.f32 %v408, 1.442695
        %v459 = vpow.pop %v458
        %v460 = vmul.f32 %v409, 1.442695
        %v461 = vpow.pop %v460
        %v462 = vmul.f32 %v410, 1.442695
        %v463 = vpow.pop %v462
        %v464 = vmul.f32 %v411, 1.442695
        %v465 = vpow.pop %v464
        %v466 = vmul.f32 %v412, 1.442695
        %v467 = vpow.pop %v466
        %v468 = vmul.f32 %v413, 1.442695
        %v469 = vpow.pop %v468
        %v470 = vmul.f32 %v414, 1.442695
        %v471 = vpow.pop %v470
        %v472 = vmul.f32 %v415, 1.442695
        %v473 = vpow.pop %v472
        %v474 = vmul.f32 %v416, 1.442695
        %v475 = vpow.pop %v474
        %v476 = vmul.f32 %v417, 1.442695
        %v477 = vpow.pop %v476
        %v478 = vadd.f32 %v419, %v421
        %479 = vadd.xlane.f32.xlu0 %v478
        %v480 = vpop.xlane.xlu0 %479
        %v481 = vadd.f32 %v423, %v425
        %482 = vadd.xlane.f32.xlu0 %v481
        %v483 = vpop.xlane.xlu0 %482
        %v484 = vadd.f32 %v427, %v429
        %485 = vadd.xlane.f32.xlu0 %v484
        %v486 = vpop.xlane.xlu0 %485
        %v487 = vadd.f32 %v431, %v433
        %488 = vadd.xlane.f32.xlu0 %v487
        %v489 = vpop.xlane.xlu0 %488
        %v490 = vadd.f32 %v435, %v437
        %491 = vadd.xlane.f32.xlu0 %v490
        %v492 = vpop.xlane.xlu0 %491
        %v493 = vadd.f32 %v439, %v441
        %494 = vadd.xlane.f32.xlu0 %v493
        %v495 = vpop.xlane.xlu0 %494
        %v496 = vadd.f32 %v443, %v445
        %497 = vadd.xlane.f32.xlu0 %v496
        %v498 = vpop.xlane.xlu0 %497
        %v499 = vadd.f32 %v447, %v449
        %500 = vadd.xlane.f32.xlu0 %v499
        %v501 = vpop.xlane.xlu0 %500
        %v502 = vadd.f32 %v451, %v453
        %503 = vadd.xlane.f32.xlu0 %v502
        %v504 = vpop.xlane.xlu0 %503
        %v505 = vadd.f32 %v455, %v457
        %506 = vadd.xlane.f32.xlu0 %v505
        %v507 = vpop.xlane.xlu0 %506
        %v508 = vadd.f32 %v459, %v461
        %509 = vadd.xlane.f32.xlu0 %v508
        %v510 = vpop.xlane.xlu0 %509
        %v511 = vadd.f32 %v463, %v465
        %512 = vadd.xlane.f32.xlu0 %v511
        %v513 = vpop.xlane.xlu0 %512
        %v514 = vadd.f32 %v467, %v469
        %515 = vadd.xlane.f32.xlu0 %v514
        %v516 = vpop.xlane.xlu0 %515
        %v517 = vadd.f32 %v471, %v473
        %518 = vadd.xlane.f32.xlu0 %v517
        %v519 = vpop.xlane.xlu0 %518
        %v520 = vadd.f32 %v475, %v477
        %521 = vadd.xlane.f32.xlu0 %v520
        %v522 = vpop.xlane.xlu0 %521
        %v523 = vlog2.pop %v480
        %v524 = vmul.f32 %v523, 0.6931472
        %v525 = vlog2.pop %v483
        %v526 = vmul.f32 %v525, 0.6931472
        %v527 = vlog2.pop %v486
        %v528 = vmul.f32 %v527, 0.6931472
        %v529 = vlog2.pop %v489
        %v530 = vmul.f32 %v529, 0.6931472
        %v531 = vlog2.pop %v492
        %v532 = vmul.f32 %v531, 0.6931472
        %v533 = vlog2.pop %v495
        %v534 = vmul.f32 %v533, 0.6931472
        %v535 = vlog2.pop %v498
        %v536 = vmul.f32 %v535, 0.6931472
        %v537 = vlog2.pop %v501
        %v538 = vmul.f32 %v537, 0.6931472
        %v539 = vlog2.pop %v504
        %v540 = vmul.f32 %v539, 0.6931472
        %v541 = vlog2.pop %v507
        %v542 = vmul.f32 %v541, 0.6931472
        %v543 = vlog2.pop %v510
        %v544 = vmul.f32 %v543, 0.6931472
        %v545 = vlog2.pop %v513
        %v546 = vmul.f32 %v545, 0.6931472
        %v547 = vlog2.pop %v516
        %v548 = vmul.f32 %v547, 0.6931472
        %v549 = vlog2.pop %v519
        %v550 = vmul.f32 %v549, 0.6931472
        %v551 = vlog2.pop %v522
        %v552 = vmul.f32 %v551, 0.6931472
        %v553 = vadd.f32 %v524, %v345
        %v554 = vadd.f32 %v526, %v348
        %v555 = vadd.f32 %v528, %v351
        %v556 = vadd.f32 %v530, %v354
        %v557 = vadd.f32 %v532, %v357
        %v558 = vadd.f32 %v534, %v360
        %v559 = vadd.f32 %v536, %v363
        %v560 = vadd.f32 %v538, %v366
        %v561 = vadd.f32 %v540, %v369
        %v562 = vadd.f32 %v542, %v372
        %v563 = vadd.f32 %v544, %v375
        %v564 = vadd.f32 %v546, %v378
        %v565 = vadd.f32 %v548, %v381
        %v566 = vadd.f32 %v550, %v384
        %v567 = vadd.f32 %v552, %v387
        %v568 = vsel %vm313, %v220, 0.0
        %v569 = vsel %vm314, %v221, 0.0
        %v570 = vsel %vm315, %v222, 0.0
        %v571 = vsel %vm316, %v223, 0.0
        %v572 = vsel %vm317, %v224, 0.0
        %v573 = vsel %vm318, %v225, 0.0
        %v574 = vsel %vm319, %v226, 0.0
        %v575 = vsel %vm320, %v227, 0.0
        %v576 = vsel %vm321, %v228, 0.0
        %v577 = vsel %vm322, %v229, 0.0
        %v578 = vsel %vm323, %v230, 0.0
        %v579 = vsel %vm324, %v231, 0.0
        %v580 = vsel %vm325, %v232, 0.0
        %v581 = vsel %vm326, %v233, 0.0
        %v582 = vsel %vm327, %v234, 0.0
        %v583 = vsel %vm328, %v235, 0.0
        %v584 = vsel %vm329, %v236, 0.0
        %v585 = vsel %vm330, %v237, 0.0
        %v586 = vsel %vm331, %v238, 0.0
        %v587 = vsel %vm332, %v239, 0.0
        %v588 = vsel %vm333, %v240, 0.0
        %v589 = vsel %vm334, %v241, 0.0
        %v590 = vsel %vm335, %v242, 0.0
        %v591 = vsel %vm336, %v243, 0.0
        %v592 = vsel %vm337, %v244, 0.0
        %v593 = vsel %vm338, %v245, 0.0
        %v594 = vsel %vm339, %v246, 0.0
        %v595 = vsel %vm340, %v247, 0.0
        %v596 = vsel %vm341, %v248, 0.0
        %v597 = vsel %vm342, %v249, 0.0
        %v598 = vadd.f32 %v568, %v569
        %599 = vadd.xlane.f32.xlu0 %v598
        %v600 = vpop.xlane.xlu0 %599
        %v601 = vadd.f32 %v570, %v571
        %602 = vadd.xlane.f32.xlu0 %v601
        %v603 = vpop.xlane.xlu0 %602
        %v604 = vadd.f32 %v572, %v573
        %605 = vadd.xlane.f32.xlu0 %v604
        %v606 = vpop.xlane.xlu0 %605
        %v607 = vadd.f32 %v574, %v575
        %608 = vadd.xlane.f32.xlu0 %v607
        %v609 = vpop.xlane.xlu0 %608
        %v610 = vadd.f32 %v576, %v577
        %611 = vadd.xlane.f32.xlu0 %v610
        %v612 = vpop.xlane.xlu0 %611
        %v613 = vadd.f32 %v578, %v579
        %614 = vadd.xlane.f32.xlu0 %v613
        %v615 = vpop.xlane.xlu0 %614
        %v616 = vadd.f32 %v580, %v581
        %617 = vadd.xlane.f32.xlu0 %v616
        %v618 = vpop.xlane.xlu0 %617
        %v619 = vadd.f32 %v582, %v583
        %620 = vadd.xlane.f32.xlu0 %v619
        %v621 = vpop.xlane.xlu0 %620
        %v622 = vadd.f32 %v584, %v585
        %623 = vadd.xlane.f32.xlu0 %v622
        %v624 = vpop.xlane.xlu0 %623
        %v625 = vadd.f32 %v586, %v587
        %626 = vadd.xlane.f32.xlu0 %v625
        %v627 = vpop.xlane.xlu0 %626
        %v628 = vadd.f32 %v588, %v589
        %629 = vadd.xlane.f32.xlu0 %v628
        %v630 = vpop.xlane.xlu0 %629
        %v631 = vadd.f32 %v590, %v591
        %632 = vadd.xlane.f32.xlu0 %v631
        %v633 = vpop.xlane.xlu0 %632
        %v634 = vadd.f32 %v592, %v593
        %635 = vadd.xlane.f32.xlu0 %v634
        %v636 = vpop.xlane.xlu0 %635
        %v637 = vadd.f32 %v594, %v595
        %638 = vadd.xlane.f32.xlu0 %v637
        %v639 = vpop.xlane.xlu0 %638
        %v640 = vadd.f32 %v596, %v597
        %641 = vadd.xlane.f32.xlu0 %v640
        %v642 = vpop.xlane.xlu0 %641
        %v643 = vsub.f32 %v553, %v600
        %v644 = vsub.f32 %v554, %v603
        %v645 = vsub.f32 %v555, %v606
        %v646 = vsub.f32 %v556, %v609
        %v647 = vsub.f32 %v557, %v612
        %v648 = vsub.f32 %v558, %v615
        %v649 = vsub.f32 %v559, %v618
        %v650 = vsub.f32 %v560, %v621
        %v651 = vsub.f32 %v561, %v624
        %v652 = vsub.f32 %v562, %v627
        %v653 = vsub.f32 %v563, %v630
        %v654 = vsub.f32 %v564, %v633
        %v655 = vsub.f32 %v565, %v636
        %v656 = vsub.f32 %v566, %v639
        %v657 = vsub.f32 %v567, %v642
        %v658 = vcvt.s32.f32 %v250
        %v659 = vcvt.s32.f32 %v251
        %v660 = vcvt.s32.f32 %v252
        %v661 = vcvt.s32.f32 %v253
        %v662 = vcvt.s32.f32 %v254
        %v663 = vcvt.s32.f32 %v255
        %v664 = vcvt.s32.f32 %v256
        %v665 = vcvt.s32.f32 %v257
        %v666 = vcvt.s32.f32 %v258
        %v667 = vcvt.s32.f32 %v259
        %v668 = vcvt.s32.f32 %v260
        %v669 = vcvt.s32.f32 %v261
        %v670 = vcvt.s32.f32 %v262
        %v671 = vcvt.s32.f32 %v263
        %v672 = vcvt.s32.f32 %v264
        %s673 = smul.u32 %s19, 120
        %v674 = vlaneseq
        %v675 = vshrl.u32 %v674, 7
        %v676 = vadd.s32 %v675, 8
        %v677 = vadd.s32 %v675, 16
        %v678 = vadd.s32 %v675, 24
        %v679 = vadd.s32 %v675, 32
        %v680 = vadd.s32 %v675, 40
        %v681 = vadd.s32 %v675, 48
        %v682 = vadd.s32 %v675, 56
        %v683 = vadd.s32 %v675, 64
        %v684 = vadd.s32 %v675, 72
        %v685 = vadd.s32 %v675, 80
        %v686 = vadd.s32 %v675, 88
        %v687 = vadd.s32 %v675, 96
        %v688 = vadd.s32 %v675, 104
        %v689 = vadd.s32 %v675, 112
        %v690 = vstv %s673
        %v691 = vadd.s32 %v690, %v675
        %v692 = vadd.s32 %v690, %v676
        %v693 = vadd.s32 %v690, %v677
        %v694 = vadd.s32 %v690, %v678
        %v695 = vadd.s32 %v690, %v679
        %v696 = vadd.s32 %v690, %v680
        %v697 = vadd.s32 %v690, %v681
        %v698 = vadd.s32 %v690, %v682
        %v699 = vadd.s32 %v690, %v683
        %v700 = vadd.s32 %v690, %v684
        %v701 = vadd.s32 %v690, %v685
        %v702 = vadd.s32 %v690, %v686
        %v703 = vadd.s32 %v690, %v687
        %v704 = vadd.s32 %v690, %v688
        %v705 = vadd.s32 %v690, %v689
        %vm706 = vcmp.lt.s32.totalorder %v691, 1000
        %vm707 = vcmp.lt.s32.totalorder %v692, 1000
        %vm708 = vcmp.lt.s32.totalorder %v693, 1000
        %vm709 = vcmp.lt.s32.totalorder %v694, 1000
        %vm710 = vcmp.lt.s32.totalorder %v695, 1000
        %vm711 = vcmp.lt.s32.totalorder %v696, 1000
        %vm712 = vcmp.lt.s32.totalorder %v697, 1000
        %vm713 = vcmp.lt.s32.totalorder %v698, 1000
        %vm714 = vcmp.lt.s32.totalorder %v699, 1000
        %vm715 = vcmp.lt.s32.totalorder %v700, 1000
        %vm716 = vcmp.lt.s32.totalorder %v701, 1000
        %vm717 = vcmp.lt.s32.totalorder %v702, 1000
        %vm718 = vcmp.lt.s32.totalorder %v703, 1000
        %vm719 = vcmp.lt.s32.totalorder %v704, 1000
        %vm720 = vcmp.lt.s32.totalorder %v705, 1000
        %v721 = vsel %vm706, %v643, 0.0
        %v722 = vsel %vm707, %v644, 0.0
        %v723 = vsel %vm708, %v645, 0.0
        %v724 = vsel %vm709, %v646, 0.0
        %v725 = vsel %vm710, %v647, 0.0
        %v726 = vsel %vm711, %v648, 0.0
        %v727 = vsel %vm712, %v649, 0.0
        %v728 = vsel %vm713, %v650, 0.0
        %v729 = vsel %vm714, %v651, 0.0
        %v730 = vsel %vm715, %v652, 0.0
        %v731 = vsel %vm716, %v653, 0.0
        %v732 = vsel %vm717, %v654, 0.0
        %v733 = vsel %vm718, %v655, 0.0
        %v734 = vsel %vm719, %v656, 0.0
        %v735 = vsel %vm720, %v657, 0.0
        %v736 = vsel %vm706, %v658, 0.0
        %v737 = vsel %vm707, %v659, 0.0
        %v738 = vsel %vm708, %v660, 0.0
        %v739 = vsel %vm709, %v661, 0.0
        %v740 = vsel %vm710, %v662, 0.0
        %v741 = vsel %vm711, %v663, 0.0
        %v742 = vsel %vm712, %v664, 0.0
        %v743 = vsel %vm713, %v665, 0.0
        %v744 = vsel %vm714, %v666, 0.0
        %v745 = vsel %vm715, %v667, 0.0
        %v746 = vsel %vm716, %v668, 0.0
        %v747 = vsel %vm717, %v669, 0.0
        %v748 = vsel %vm718, %v670, 0.0
        %v749 = vsel %vm719, %v671, 0.0
        %v750 = vsel %vm720, %v672, 0.0
        %vm751 = vcmp.eq.s32.totalorder %v266, 0
        %vm752 = vcmask 7168
        %v753 = vsel %vm752, %v721, 0.0
        %v754 = vsel %vm752, %v722, 0.0
        %v755 = vadd.f32 %v753, %v754
        %v756 = vsel %vm752, %v723, 0.0
        %v757 = vadd.f32 %v755, %v756
        %v758 = vsel %vm752, %v724, 0.0
        %v759 = vadd.f32 %v757, %v758
        %v760 = vsel %vm752, %v725, 0.0
        %v761 = vadd.f32 %v759, %v760
        %v762 = vsel %vm752, %v726, 0.0
        %v763 = vadd.f32 %v761, %v762
        %v764 = vsel %vm752, %v727, 0.0
        %v765 = vadd.f32 %v763, %v764
        %v766 = vsel %vm752, %v728, 0.0
        %v767 = vadd.f32 %v765, %v766
        %v768 = vsel %vm752, %v729, 0.0
        %v769 = vadd.f32 %v767, %v768
        %v770 = vsel %vm752, %v730, 0.0
        %v771 = vadd.f32 %v769, %v770
        %v772 = vsel %vm752, %v731, 0.0
        %v773 = vadd.f32 %v771, %v772
        %v774 = vsel %vm752, %v732, 0.0
        %v775 = vadd.f32 %v773, %v774
        %v776 = vsel %vm752, %v733, 0.0
        %v777 = vadd.f32 %v775, %v776
        %v778 = vsel %vm752, %v734, 0.0
        %v779 = vadd.f32 %v777, %v778
        %v780 = vsel %vm752, %v735, 0.0
        %v781 = vadd.f32 %v779, %v780
        %782 = vadd.xlane.f32.xlu0 %v781
        %v783 = vpop.xlane.xlu0 %782
        %v784 = vrot.slane %v783, 4
        %v785 = vadd.f32 %v783, %v784
        %v786 = vrot.slane %v785, 2
        %v787 = vadd.f32 %v785, %v786
        %v788 = vrot.slane %v787, 1
        %v789 = vadd.f32 %v787, %v788
        %s790 = vtos %v789
        %vm791 = vcmp.eq.s32.totalorder %v266, 1
        %v792 = vsel %vm752, %v736, 0.0
        %v793 = vsel %vm752, %v737, 0.0
        %v794 = vadd.f32 %v792, %v793
        %v795 = vsel %vm752, %v738, 0.0
        %v796 = vadd.f32 %v794, %v795
        %v797 = vsel %vm752, %v739, 0.0
        %v798 = vadd.f32 %v796, %v797
        %v799 = vsel %vm752, %v740, 0.0
        %v800 = vadd.f32 %v798, %v799
        %v801 = vsel %vm752, %v741, 0.0
        %v802 = vadd.f32 %v800, %v801
        %v803 = vsel %vm752, %v742, 0.0
        %v804 = vadd.f32 %v802, %v803
        %v805 = vsel %vm752, %v743, 0.0
        %v806 = vadd.f32 %v804, %v805
        %v807 = vsel %vm752, %v744, 0.0
        %v808 = vadd.f32 %v806, %v807
        %v809 = vsel %vm752, %v745, 0.0
        %v810 = vadd.f32 %v808, %v809
        %v811 = vsel %vm752, %v746, 0.0
        %v812 = vadd.f32 %v810, %v811
        %v813 = vsel %vm752, %v747, 0.0
        %v814 = vadd.f32 %v812, %v813
        %v815 = vsel %vm752, %v748, 0.0
        %v816 = vadd.f32 %v814, %v815
        %v817 = vsel %vm752, %v749, 0.0
        %v818 = vadd.f32 %v816, %v817
        %v819 = vsel %vm752, %v750, 0.0
        %v820 = vadd.f32 %v818, %v819
        %821 = vadd.xlane.f32.xlu0 %v820
        %v822 = vpop.xlane.xlu0 %821
        %v823 = vrot.slane %v822, 4
        %v824 = vadd.f32 %v822, %v823
        %v825 = vrot.slane %v824, 2
        %v826 = vadd.f32 %v824, %v825
        %v827 = vrot.slane %v826, 1
        %v828 = vadd.f32 %v826, %v827
        %s829 = vtos %v828
        %v830 = vstv %s829
        %v831 = vsel %vm791, %v830, 0.0
        %v832 = vstv %s790
        %v833 = vsel %vm751, %v832, %v831
        %834 = vst [vmem:[%s199] sm:$0x1] %v833
        %s835 = sand.u32 %s79, 1
        %s836 = scalar_lea.sflag [#allocation4], %s835
        %s837 = sand.u32 %s79, 1
        %s838 = scalar_lea.vmem [#allocation5], %s837
        // Predicated region
        $region33: #{tpu_custom_call.1} parent=27 // pred_check
          %p839 = pneg %p89
        $region34: #{tpu_custom_call.1} parent=27 // pred_check_branch
          %841 = sbr.rel (%p839) target = $region36
        $region35: #{tpu_custom_call.1} parent=27 // pred_region
          %843 = vsyncadd %s836, 0
          %s844 = scalar_lea.hbm %s2, %s19
          %s846 = sshll.u32 %s838, 4
          %s847 = int_to_ptr.vmem [resolvable:$true] %s846
          %s848 = sshll.u32 %s844, 4
          %s849 = int_to_ptr.hbm [resolvable:$true] %s848
          %851 = dma.vmem_to_hbm [thread:$0]  %s847, 16, %s849, %s836
        $region36: #{tpu_custom_call.1} parent=27 // pred_fallthru
          _
      $region28: #{tpu_custom_call.1} parent=5 // pred_fallthru
        _
      %p852 = scmp.le.s32.totalorder 2, %s14
      // Predicated region
      $region37: #{tpu_custom_call.1} parent=5 // pred_check
        %p853 = pneg %p852
      $region38: #{tpu_custom_call.1} parent=5 // pred_check_branch
        %855 = sbr.rel (%p853) target = $region40
      $region39: #{tpu_custom_call.1} parent=5 // pred_region
        %s856 = ssub.s32 %s14, 2
        // Predicated region
        $region41: #{tpu_custom_call.1} parent=39 // pred_check
          %p857 = pneg %p95
        $region42: #{tpu_custom_call.1} parent=39 // pred_check_branch
          %859 = sbr.rel (%p857) target = $region44
        $region43: #{tpu_custom_call.1} parent=39 // pred_region
          %s860 = sand.u32 %s80, 1
          %s861 = scalar_lea.sflag [#allocation4], %s860
          %s862 = sand.u32 %s80, 1
          %s863 = scalar_lea.vmem [#allocation5], %s862
          %865 = dma.done %s861, 16
        $region44: #{tpu_custom_call.1} parent=39 // pred_fallthru
          _
      $region40: #{tpu_custom_call.1} parent=5 // pred_fallthru
        _
    $region6: #{tpu_custom_call.1} parent=1 // loop_footer
      %s18 = sadd.s32 1, %s14
    $region7: #{tpu_custom_call.1} parent=1 // loop_footer_branch
      %13 = sbr.rel target = $region3
    $region8: #{tpu_custom_call.1} parent=1 // loop_exit
      _
    %866 = vsyncpa [#allocation3], 1
    %s867 = scalar_lea.sflag [#allocation3], 1
    %868 = vsyncpa %s867, 1
    %869 = vsyncpa [#allocation4], 1
    %s870 = scalar_lea.sflag [#allocation4], 1
    %871 = vsyncpa %s870, 1

</llo_original>
